<compile_context>
chip_gen: v7x
topology: tpu7x:2x2x1
jax: 0.10.0
libtpu: 0.0.40
codegen_flags: <defaults>
</compile_context>

<pallas_src>
import jax
import jax.numpy as jnp
from jax.experimental import pallas as pl
from jax.experimental.pallas import tpu as pltpu

LANE = 128      # TPU lane width; every channel dim is zero-padded to this.
SUBPACK = 16    # bf16 sublane packing; weight-block K rows padded to this.


def _rpad(n, m=SUBPACK):
    return ((n + m - 1) // m) * m


def _slab_layout(c_in, c_hid, c_out):
    """Row layout of the packed bf16 weight slab (9 blocks, compact K)."""
    ks = (_rpad(c_in), _rpad(c_in),        # W_rel1, W_root1
          _rpad(c_hid), _rpad(c_hid),      # W_rel2, W_root2
          _rpad(c_hid), _rpad(c_hid),      # W_rel3, W_root3
          _rpad(c_hid), _rpad(c_hid),      # WL1, WL2
          _rpad(c_out))                    # WL3
    offs, o = [], 0
    for k in ks:
        offs.append(o)
        o += k
    return ks, tuple(offs), o


# ----------------------------- Pallas kernel ------------------------------ #

def _make_kernel(B, N, c_in, c_hid, c_out):
    BN = B * N
    ks, offs, _ = _slab_layout(c_in, c_hid, c_out)
    (k_r1, _, k_r2, _, k_r3, _, k_l1, k_l2, k_l3) = ks
    (o_rel1, o_root1, o_rel2, o_root2, o_rel3, o_root3, o_l1, o_l2, o_l3) = offs
    inv_m = 1.0 / BN
    eps = 1e-5

    def kernel(x_ref, adj_ref, w_ref, v_ref, out_ref):
        adj = adj_ref[...]                                   # (BN, BN) bf16 block-diag
        vecs = v_ref[...]                                    # (16, LANE) f32

        # Exact degree reciprocal (deg is a small positive integer).
        deg = jnp.sum(adj.astype(jnp.float32), axis=-1, keepdims=True)
        inv_deg = 1.0 / jnp.maximum(deg, 1.0)                # (BN, 1) f32

        def sage_relu_bn(h, k, o_rel, o_root, v_row):
            """DenseSAGEConv -> ReLU -> BatchNorm1d (training-mode batch stats)."""
            h_bf = h[:, :k].astype(jnp.bfloat16)             # (BN, k)
            # Mean-neighbour aggregation as one 2-D matmul (block-diag adj).
            agg = jnp.dot(adj, h_bf,
                          preferred_element_type=jnp.float32) * inv_deg
            # Two dots instead of concat([agg, h]) @ [W_rel; W_root].
            y = (jnp.dot(agg.astype(jnp.bfloat16), w_ref[o_rel:o_rel + k, :],
                         preferred_element_type=jnp.float32)
                 + jnp.dot(h_bf, w_ref[o_root:o_root + k, :],
                           preferred_element_type=jnp.float32)
                 + vecs[v_row:v_row + 1, :])
            y = jnp.maximum(y, 0.0)
            # Two-pass BatchNorm statistics over the flattened (B*N, C) rows.
            mu = jnp.sum(y, axis=0, keepdims=True) * inv_m
            d = y - mu
            var = jnp.sum(d * d, axis=0, keepdims=True) * inv_m
            scale = vecs[v_row + 1:v_row + 2, :] * jax.lax.rsqrt(var + eps)
            return d * scale + vecs[v_row + 2:v_row + 3, :]  # (BN, LANE) f32

        x0 = x_ref[...]                                      # (BN, LANE) f32
        x1 = sage_relu_bn(x0, k_r1, o_rel1, o_root1, 0)
        x2 = sage_relu_bn(x1, k_r2, o_rel2, o_root2, 3)
        x3 = sage_relu_bn(x2, k_r3, o_rel3, o_root3, 6)

        # Final Linear on concat([x1, x2, x3], -1) as three dots (no concat).
        y = (jnp.dot(x1[:, :k_l1].astype(jnp.bfloat16), w_ref[o_l1:o_l1 + k_l1, :],
                     preferred_element_type=jnp.float32)
             + jnp.dot(x2[:, :k_l2].astype(jnp.bfloat16), w_ref[o_l2:o_l2 + k_l2, :],
                       preferred_element_type=jnp.float32)
             + jnp.dot(x3[:, :k_l3].astype(jnp.bfloat16), w_ref[o_l3:o_l3 + k_l3, :],
                       preferred_element_type=jnp.float32)
             + vecs[9:10, :])
        out_ref[...] = jnp.maximum(y, 0.0)                   # lane-dense (BN,128) store

    return kernel


# ------------------------- one-time host-side packing ---------------------- #

def prepack_params(params, c_in, c_hid, c_out):
    """One-time packing of the 19 parameter tensors into two contiguous slabs."""
    ks, _, _ = _slab_layout(c_in, c_hid, c_out)

    def pad_w(a, k):
        a = jnp.asarray(a, jnp.float32)
        return jnp.pad(a, ((0, k - a.shape[0]), (0, LANE - a.shape[1])))

    def pad_v(a):
        a = jnp.asarray(a, jnp.float32).reshape(1, -1)
        return jnp.pad(a, ((0, 0), (0, LANE - a.shape[-1])))

    w_order = ["w_rel1", "w_root1", "w_rel2", "w_root2", "w_rel3", "w_root3",
               "wl1", "wl2", "wl3"]
    weights = jnp.concatenate(
        [pad_w(params[n], k) for n, k in zip(w_order, ks)],
        axis=0).astype(jnp.bfloat16)                          # (sum K_pad, 128) bf16

    v_order = ["b1", "g1", "be1", "b2", "g2", "be2", "b3", "g3", "be3", "wl_b"]
    vecs = jnp.concatenate([pad_v(params[n]) for n in v_order]
                           + [jnp.zeros((6, LANE), jnp.float32)], axis=0)  # (16, 128)
    return weights, vecs


def prepack_inputs(x, adj):
    """Pad x to the 128-lane width and build the block-diagonal adjacency."""
    B, N, c_in = x.shape
    x2d = jnp.pad(x.reshape(B * N, c_in).astype(jnp.float32),
                  ((0, 0), (0, LANE - c_in)))                 # (BN, 128) f32
    eye = jnp.eye(B, dtype=jnp.float32)
    adj_bd = jnp.einsum("bij,bc->bicj", adj.astype(jnp.float32),
                        eye).reshape(B * N, B * N)
    return x2d, adj_bd.astype(jnp.bfloat16)                   # adj is 0/1 -> exact


# ------------------------------ forward wrapper ---------------------------- #

def gnn_forward(x2d, adj_bd, weights, vecs, *, B, N, c_in, c_hid, c_out):
    """Full GNN forward in one Pallas call (everything VMEM-resident)."""
    BN = B * N
    kernel = _make_kernel(B, N, c_in, c_hid, c_out)
    vmem_spec = pl.BlockSpec(memory_space=pltpu.MemorySpace.VMEM)

    # Generation-aware VMEM budget: footprint-scaled, capped at 75% of physical.
    try:
        cap = int(pltpu.get_tpu_info().vmem_capacity_bytes)
    except Exception:
        cap = 64 << 20
    io_bytes = sum(int(a.size) * a.dtype.itemsize
                   for a in (x2d, adj_bd, weights, vecs)) + BN * LANE * 4
    vmem_limit = int(min((cap * 3) // 4, max(4 * io_bytes, 16 << 20)))

    out = pl.pallas_call(
        kernel,
        out_shape=jax.ShapeDtypeStruct((BN, LANE), jnp.float32),
        in_specs=[vmem_spec] * 4,
        out_specs=vmem_spec,
        compiler_params=pltpu.CompilerParams(vmem_limit_bytes=vmem_limit),
    )(x2d, adj_bd, weights, vecs)

    return out[:, :c_out].reshape(B, N, c_out)


# --------------------------- reference (plain JAX) ------------------------- #

def gnn_reference(x, adj, params):
    deg = jnp.clip(jnp.sum(adj, axis=-1, keepdims=True), 1.0, None)

    def sage(h, w_rel, w_root, b):
        agg = jnp.einsum("bij,bjc->bic", adj, h) / deg
        return agg @ w_rel + h @ w_root + b

    def bn(h, gamma, beta, eps=1e-5):
        mu = jnp.mean(h, axis=(0, 1), keepdims=True)
        var = jnp.mean((h - mu) ** 2, axis=(0, 1), keepdims=True)
        return gamma * (h - mu) / jnp.sqrt(var + eps) + beta

    x1 = bn(jax.nn.relu(sage(x, params["w_rel1"], params["w_root1"], params["b1"])),
            params["g1"], params["be1"])
    x2 = bn(jax.nn.relu(sage(x1, params["w_rel2"], params["w_root2"], params["b2"])),
            params["g2"], params["be2"])
    x3 = bn(jax.nn.relu(sage(x2, params["w_rel3"], params["w_root3"], params["b3"])),
            params["g3"], params["be3"])
    cat = jnp.concatenate([x1, x2, x3], axis=-1)
    w_lin = jnp.concatenate([params["wl1"], params["wl2"], params["wl3"]], axis=0)
    return jax.nn.relu(cat @ w_lin + params["wl_b"])


# ------------------------------ param init -------------------------------- #

def init_params(key, in_channels, hidden_channels, out_channels):
    ks = jax.random.split(key, 16)
    s = 0.1

    def lin(k, ci, co):
        return s * jax.random.normal(k, (ci, co), jnp.float32)

    p = {
        "w_rel1": lin(ks[0], in_channels, hidden_channels),
        "w_root1": lin(ks[1], in_channels, hidden_channels),
        "b1": s * jax.random.normal(ks[2], (1, hidden_channels), jnp.float32),
        "g1": 1.0 + s * jax.random.normal(ks[3], (1, 1, hidden_channels), jnp.float32),
        "be1": s * jax.random.normal(ks[4], (1, 1, hidden_channels), jnp.float32),
        "w_rel2": lin(ks[5], hidden_channels, hidden_channels),
        "w_root2": lin(ks[6], hidden_channels, hidden_channels),
        "b2": s * jax.random.normal(ks[7], (1, hidden_channels), jnp.float32),
        "g2": 1.0 + s * jax.random.normal(ks[8], (1, 1, hidden_channels), jnp.float32),
        "be2": s * jax.random.normal(ks[9], (1, 1, hidden_channels), jnp.float32),
        "w_rel3": lin(ks[10], hidden_channels, out_channels),
        "w_root3": lin(ks[11], hidden_channels, out_channels),
        "b3": s * jax.random.normal(ks[12], (1, out_channels), jnp.float32),
        "g3": 1.0 + s * jax.random.normal(ks[13], (1, 1, out_channels), jnp.float32),
        "be3": s * jax.random.normal(ks[14], (1, 1, out_channels), jnp.float32),
    }
    k_l = jax.random.split(ks[15], 4)
    p["wl1"] = lin(k_l[0], hidden_channels, out_channels)
    p["wl2"] = lin(k_l[1], hidden_channels, out_channels)
    p["wl3"] = lin(k_l[2], out_channels, out_channels)
    p["wl_b"] = s * jax.random.normal(k_l[3], (1, out_channels), jnp.float32)
    return p


# --------------------------------- main ------------------------------------ #

if __name__ == "__main__":
    B, N = 2, 16
    in_channels, hidden_channels, out_channels = 8, 32, 16

    key = jax.random.PRNGKey(0)
    k_x, k_adj, k_p = jax.random.split(key, 3)

    x = jax.random.normal(k_x, (B, N, in_channels), jnp.float32)
    # symmetric 0/1 adjacency, no self loops (add_loop=False default)
    a = (jax.random.uniform(k_adj, (B, N, N)) > 0.6).astype(jnp.float32)
    adj = jnp.clip(a + jnp.swapaxes(a, 1, 2), 0.0, 1.0)
    adj = adj * (1.0 - jnp.eye(N, dtype=jnp.float32)[None])

    params = init_params(k_p, in_channels, hidden_channels, out_channels)

    # One-time host-side packing (hoisted out of the forward path).
    weights, vecs = prepack_params(params, in_channels, hidden_channels, out_channels)
    x2d, adj_bd = prepack_inputs(x, adj)

    out = gnn_forward(x2d, adj_bd, weights, vecs, B=B, N=N,
                      c_in=in_channels, c_hid=hidden_channels, c_out=out_channels)
    out = jax.block_until_ready(out)

    ref = gnn_reference(x, adj, params)
    assert out.shape == (B, N, out_channels)
    # bf16 MXU operands vs f32 reference: validate with a norm-wise error bound.
    rel_err = float(jnp.linalg.norm(out - ref) / jnp.linalg.norm(ref))
    assert rel_err < 8e-2, f"mismatch vs JAX reference (rel_err={rel_err})"

    # TODO(synk): normalize=True / mask / add_loop paths of DenseSAGEConv are not
    # exercised (GNN defaults: normalize=False, add_loop=False, mask=None).
    # TODO(synk): BatchNorm running_mean/var in-place updates (training-mode side
    # effect) are not materialized; only the forward output is produced.
    print("KERNEL_OK")
</pallas_src>

<mosaic_0001>
module attributes {stable_mosaic.version = 11 : i64} {
  func.func @kernel(%arg0: memref<32x128xf32, #tpu.memory_space<vmem>>, %arg1: memref<32x32xbf16, #tpu.memory_space<vmem>>, %arg2: memref<240x128xbf16, #tpu.memory_space<vmem>>, %arg3: memref<16x128xf32, #tpu.memory_space<vmem>>, %arg4: memref<32x128xf32, #tpu.memory_space<vmem>>) attributes {dimension_semantics = [], scalar_prefetch = 0 : i64, scratch_operands = 0 : i64, tpu.core_type = #tpu.core_type<tc>} {
    %c0 = arith.constant 0 : index
    %c0_0 = arith.constant 0 : index
    %0 = vector.load %arg1[%c0, %c0_0] : memref<32x32xbf16, #tpu.memory_space<vmem>>, vector<32x32xbf16>
    %c0_1 = arith.constant 0 : index
    %c0_2 = arith.constant 0 : index
    %1 = vector.load %arg3[%c0_1, %c0_2] : memref<16x128xf32, #tpu.memory_space<vmem>>, vector<16x128xf32>
    %2 = arith.extf %0 : vector<32x32xbf16> to vector<32x32xf32>
    %cst = arith.constant dense<0.000000e+00> : vector<32xf32>
    %3 = vector.multi_reduction <add>, %2, %cst [1] : vector<32x32xf32> to vector<32xf32>
    %4 = vector.shape_cast %3 : vector<32xf32> to vector<32x1xf32>
    %cst_3 = arith.constant 1.000000e+00 : f32
    %5 = vector.broadcast %cst_3 : f32 to vector<32x1xf32>
    %6 = arith.maximumf %4, %5 : vector<32x1xf32>
    %cst_4 = arith.constant 1.000000e+00 : f32
    %7 = vector.broadcast %cst_4 : f32 to vector<32x1xf32>
    %8 = arith.divf %7, %6 : vector<32x1xf32>
    %c0_5 = arith.constant 0 : index
    %c0_6 = arith.constant 0 : index
    %9 = vector.load %arg0[%c0_5, %c0_6] : memref<32x128xf32, #tpu.memory_space<vmem>>, vector<32x128xf32>
    %10 = vector.extract_strided_slice %9 {offsets = [0, 0], sizes = [32, 16], strides = [1, 1]} : vector<32x128xf32> to vector<32x16xf32>
    %11 = arith.truncf %10 : vector<32x16xf32> to vector<32x16xbf16>
    %cst_7 = arith.constant dense<0.000000e+00> : vector<32x16xf32>
    %12 = tpu.matmul %0, %11, %cst_7 {dimension_numbers = #tpu.dot_dimension_numbers<[1], [0], [0], [1], [0, 0, 1, 1], [], []>} : vector<32x32xbf16>, vector<32x16xbf16>, vector<32x16xf32> -> vector<32x16xf32>
    %13 = vector.broadcast %8 : vector<32x1xf32> to vector<32x16xf32>
    %14 = arith.mulf %12, %13 : vector<32x16xf32>
    %15 = arith.truncf %14 : vector<32x16xf32> to vector<32x16xbf16>
    %c0_8 = arith.constant 0 : index
    %c0_9 = arith.constant 0 : index
    %16 = vector.load %arg2[%c0_8, %c0_9] : memref<240x128xbf16, #tpu.memory_space<vmem>>, vector<16x128xbf16>
    %cst_10 = arith.constant dense<0.000000e+00> : vector<32x128xf32>
    %17 = tpu.matmul %15, %16, %cst_10 {dimension_numbers = #tpu.dot_dimension_numbers<[1], [0], [0], [1], [0, 0, 1, 1], [], []>} : vector<32x16xbf16>, vector<16x128xbf16>, vector<32x128xf32> -> vector<32x128xf32>
    %c16 = arith.constant 16 : index
    %c0_11 = arith.constant 0 : index
    %18 = vector.load %arg2[%c16, %c0_11] : memref<240x128xbf16, #tpu.memory_space<vmem>>, vector<16x128xbf16>
    %cst_12 = arith.constant dense<0.000000e+00> : vector<32x128xf32>
    %19 = tpu.matmul %11, %18, %cst_12 {dimension_numbers = #tpu.dot_dimension_numbers<[1], [0], [0], [1], [0, 0, 1, 1], [], []>} : vector<32x16xbf16>, vector<16x128xbf16>, vector<32x128xf32> -> vector<32x128xf32>
    %20 = arith.addf %17, %19 : vector<32x128xf32>
    %21 = vector.extract_strided_slice %1 {offsets = [0, 0], sizes = [1, 128], strides = [1, 1]} : vector<16x128xf32> to vector<1x128xf32>
    %22 = vector.broadcast %21 : vector<1x128xf32> to vector<32x128xf32>
    %23 = arith.addf %20, %22 : vector<32x128xf32>
    %cst_13 = arith.constant 0.000000e+00 : f32
    %24 = vector.broadcast %cst_13 : f32 to vector<32x128xf32>
    %25 = arith.maximumf %23, %24 : vector<32x128xf32>
    %cst_14 = arith.constant dense<0.000000e+00> : vector<128xf32>
    %26 = vector.multi_reduction <add>, %25, %cst_14 [0] : vector<32x128xf32> to vector<128xf32>
    %27 = vector.shape_cast %26 : vector<128xf32> to vector<1x128xf32>
    %cst_15 = arith.constant 3.125000e-02 : f32
    %28 = vector.broadcast %cst_15 : f32 to vector<1x128xf32>
    %29 = arith.mulf %27, %28 : vector<1x128xf32>
    %30 = vector.broadcast %29 : vector<1x128xf32> to vector<32x128xf32>
    %31 = arith.subf %25, %30 : vector<32x128xf32>
    %32 = arith.mulf %31, %31 : vector<32x128xf32>
    %cst_16 = arith.constant dense<0.000000e+00> : vector<128xf32>
    %33 = vector.multi_reduction <add>, %32, %cst_16 [0] : vector<32x128xf32> to vector<128xf32>
    %34 = vector.shape_cast %33 : vector<128xf32> to vector<1x128xf32>
    %cst_17 = arith.constant 3.125000e-02 : f32
    %35 = vector.broadcast %cst_17 : f32 to vector<1x128xf32>
    %36 = arith.mulf %34, %35 : vector<1x128xf32>
    %37 = vector.extract_strided_slice %1 {offsets = [1, 0], sizes = [1, 128], strides = [1, 1]} : vector<16x128xf32> to vector<1x128xf32>
    %cst_18 = arith.constant 9.99999974E-6 : f32
    %38 = vector.broadcast %cst_18 : f32 to vector<1x128xf32>
    %39 = arith.addf %36, %38 : vector<1x128xf32>
    %40 = math.rsqrt %39 : vector<1x128xf32>
    %41 = arith.mulf %37, %40 : vector<1x128xf32>
    %42 = vector.broadcast %41 : vector<1x128xf32> to vector<32x128xf32>
    %43 = arith.mulf %31, %42 : vector<32x128xf32>
    %44 = vector.extract_strided_slice %1 {offsets = [2, 0], sizes = [1, 128], strides = [1, 1]} : vector<16x128xf32> to vector<1x128xf32>
    %45 = vector.broadcast %44 : vector<1x128xf32> to vector<32x128xf32>
    %46 = arith.addf %43, %45 : vector<32x128xf32>
    %47 = vector.extract_strided_slice %46 {offsets = [0, 0], sizes = [32, 32], strides = [1, 1]} : vector<32x128xf32> to vector<32x32xf32>
    %48 = arith.truncf %47 : vector<32x32xf32> to vector<32x32xbf16>
    %cst_19 = arith.constant dense<0.000000e+00> : vector<32x32xf32>
    %49 = tpu.matmul %0, %48, %cst_19 {dimension_numbers = #tpu.dot_dimension_numbers<[1], [0], [0], [1], [0, 0, 1, 1], [], []>} : vector<32x32xbf16>, vector<32x32xbf16>, vector<32x32xf32> -> vector<32x32xf32>
    %50 = vector.broadcast %8 : vector<32x1xf32> to vector<32x32xf32>
    %51 = arith.mulf %49, %50 : vector<32x32xf32>
    %52 = arith.truncf %51 : vector<32x32xf32> to vector<32x32xbf16>
    %c32 = arith.constant 32 : index
    %c0_20 = arith.constant 0 : index
    %53 = vector.load %arg2[%c32, %c0_20] : memref<240x128xbf16, #tpu.memory_space<vmem>>, vector<32x128xbf16>
    %cst_21 = arith.constant dense<0.000000e+00> : vector<32x128xf32>
    %54 = tpu.matmul %52, %53, %cst_21 {dimension_numbers = #tpu.dot_dimension_numbers<[1], [0], [0], [1], [0, 0, 1, 1], [], []>} : vector<32x32xbf16>, vector<32x128xbf16>, vector<32x128xf32> -> vector<32x128xf32>
    %c64 = arith.constant 64 : index
    %c0_22 = arith.constant 0 : index
    %55 = vector.load %arg2[%c64, %c0_22] : memref<240x128xbf16, #tpu.memory_space<vmem>>, vector<32x128xbf16>
    %cst_23 = arith.constant dense<0.000000e+00> : vector<32x128xf32>
    %56 = tpu.matmul %48, %55, %cst_23 {dimension_numbers = #tpu.dot_dimension_numbers<[1], [0], [0], [1], [0, 0, 1, 1], [], []>} : vector<32x32xbf16>, vector<32x128xbf16>, vector<32x128xf32> -> vector<32x128xf32>
    %57 = arith.addf %54, %56 : vector<32x128xf32>
    %58 = vector.extract_strided_slice %1 {offsets = [3, 0], sizes = [1, 128], strides = [1, 1]} : vector<16x128xf32> to vector<1x128xf32>
    %59 = vector.broadcast %58 : vector<1x128xf32> to vector<32x128xf32>
    %60 = arith.addf %57, %59 : vector<32x128xf32>
    %cst_24 = arith.constant 0.000000e+00 : f32
    %61 = vector.broadcast %cst_24 : f32 to vector<32x128xf32>
    %62 = arith.maximumf %60, %61 : vector<32x128xf32>
    %cst_25 = arith.constant dense<0.000000e+00> : vector<128xf32>
    %63 = vector.multi_reduction <add>, %62, %cst_25 [0] : vector<32x128xf32> to vector<128xf32>
    %64 = vector.shape_cast %63 : vector<128xf32> to vector<1x128xf32>
    %cst_26 = arith.constant 3.125000e-02 : f32
    %65 = vector.broadcast %cst_26 : f32 to vector<1x128xf32>
    %66 = arith.mulf %64, %65 : vector<1x128xf32>
    %67 = vector.broadcast %66 : vector<1x128xf32> to vector<32x128xf32>
    %68 = arith.subf %62, %67 : vector<32x128xf32>
    %69 = arith.mulf %68, %68 : vector<32x128xf32>
    %cst_27 = arith.constant dense<0.000000e+00> : vector<128xf32>
    %70 = vector.multi_reduction <add>, %69, %cst_27 [0] : vector<32x128xf32> to vector<128xf32>
    %71 = vector.shape_cast %70 : vector<128xf32> to vector<1x128xf32>
    %cst_28 = arith.constant 3.125000e-02 : f32
    %72 = vector.broadcast %cst_28 : f32 to vector<1x128xf32>
    %73 = arith.mulf %71, %72 : vector<1x128xf32>
    %74 = vector.extract_strided_slice %1 {offsets = [4, 0], sizes = [1, 128], strides = [1, 1]} : vector<16x128xf32> to vector<1x128xf32>
    %cst_29 = arith.constant 9.99999974E-6 : f32
    %75 = vector.broadcast %cst_29 : f32 to vector<1x128xf32>
    %76 = arith.addf %73, %75 : vector<1x128xf32>
    %77 = math.rsqrt %76 : vector<1x128xf32>
    %78 = arith.mulf %74, %77 : vector<1x128xf32>
    %79 = vector.broadcast %78 : vector<1x128xf32> to vector<32x128xf32>
    %80 = arith.mulf %68, %79 : vector<32x128xf32>
    %81 = vector.extract_strided_slice %1 {offsets = [5, 0], sizes = [1, 128], strides = [1, 1]} : vector<16x128xf32> to vector<1x128xf32>
    %82 = vector.broadcast %81 : vector<1x128xf32> to vector<32x128xf32>
    %83 = arith.addf %80, %82 : vector<32x128xf32>
    %84 = vector.extract_strided_slice %83 {offsets = [0, 0], sizes = [32, 32], strides = [1, 1]} : vector<32x128xf32> to vector<32x32xf32>
    %85 = arith.truncf %84 : vector<32x32xf32> to vector<32x32xbf16>
    %cst_30 = arith.constant dense<0.000000e+00> : vector<32x32xf32>
    %86 = tpu.matmul %0, %85, %cst_30 {dimension_numbers = #tpu.dot_dimension_numbers<[1], [0], [0], [1], [0, 0, 1, 1], [], []>} : vector<32x32xbf16>, vector<32x32xbf16>, vector<32x32xf32> -> vector<32x32xf32>
    %87 = vector.broadcast %8 : vector<32x1xf32> to vector<32x32xf32>
    %88 = arith.mulf %86, %87 : vector<32x32xf32>
    %89 = arith.truncf %88 : vector<32x32xf32> to vector<32x32xbf16>
    %c96 = arith.constant 96 : index
    %c0_31 = arith.constant 0 : index
    %90 = vector.load %arg2[%c96, %c0_31] : memref<240x128xbf16, #tpu.memory_space<vmem>>, vector<32x128xbf16>
    %cst_32 = arith.constant dense<0.000000e+00> : vector<32x128xf32>
    %91 = tpu.matmul %89, %90, %cst_32 {dimension_numbers = #tpu.dot_dimension_numbers<[1], [0], [0], [1], [0, 0, 1, 1], [], []>} : vector<32x32xbf16>, vector<32x128xbf16>, vector<32x128xf32> -> vector<32x128xf32>
    %c128 = arith.constant 128 : index
    %c0_33 = arith.constant 0 : index
    %92 = vector.load %arg2[%c128, %c0_33] : memref<240x128xbf16, #tpu.memory_space<vmem>>, vector<32x128xbf16>
    %cst_34 = arith.constant dense<0.000000e+00> : vector<32x128xf32>
    %93 = tpu.matmul %85, %92, %cst_34 {dimension_numbers = #tpu.dot_dimension_numbers<[1], [0], [0], [1], [0, 0, 1, 1], [], []>} : vector<32x32xbf16>, vector<32x128xbf16>, vector<32x128xf32> -> vector<32x128xf32>
    %94 = arith.addf %91, %93 : vector<32x128xf32>
    %95 = vector.extract_strided_slice %1 {offsets = [6, 0], sizes = [1, 128], strides = [1, 1]} : vector<16x128xf32> to vector<1x128xf32>
    %96 = vector.broadcast %95 : vector<1x128xf32> to vector<32x128xf32>
    %97 = arith.addf %94, %96 : vector<32x128xf32>
    %cst_35 = arith.constant 0.000000e+00 : f32
    %98 = vector.broadcast %cst_35 : f32 to vector<32x128xf32>
    %99 = arith.maximumf %97, %98 : vector<32x128xf32>
    %cst_36 = arith.constant dense<0.000000e+00> : vector<128xf32>
    %100 = vector.multi_reduction <add>, %99, %cst_36 [0] : vector<32x128xf32> to vector<128xf32>
    %101 = vector.shape_cast %100 : vector<128xf32> to vector<1x128xf32>
    %cst_37 = arith.constant 3.125000e-02 : f32
    %102 = vector.broadcast %cst_37 : f32 to vector<1x128xf32>
    %103 = arith.mulf %101, %102 : vector<1x128xf32>
    %104 = vector.broadcast %103 : vector<1x128xf32> to vector<32x128xf32>
    %105 = arith.subf %99, %104 : vector<32x128xf32>
    %106 = arith.mulf %105, %105 : vector<32x128xf32>
    %cst_38 = arith.constant dense<0.000000e+00> : vector<128xf32>
    %107 = vector.multi_reduction <add>, %106, %cst_38 [0] : vector<32x128xf32> to vector<128xf32>
    %108 = vector.shape_cast %107 : vector<128xf32> to vector<1x128xf32>
    %cst_39 = arith.constant 3.125000e-02 : f32
    %109 = vector.broadcast %cst_39 : f32 to vector<1x128xf32>
    %110 = arith.mulf %108, %109 : vector<1x128xf32>
    %111 = vector.extract_strided_slice %1 {offsets = [7, 0], sizes = [1, 128], strides = [1, 1]} : vector<16x128xf32> to vector<1x128xf32>
    %cst_40 = arith.constant 9.99999974E-6 : f32
    %112 = vector.broadcast %cst_40 : f32 to vector<1x128xf32>
    %113 = arith.addf %110, %112 : vector<1x128xf32>
    %114 = math.rsqrt %113 : vector<1x128xf32>
    %115 = arith.mulf %111, %114 : vector<1x128xf32>
    %116 = vector.broadcast %115 : vector<1x128xf32> to vector<32x128xf32>
    %117 = arith.mulf %105, %116 : vector<32x128xf32>
    %118 = vector.extract_strided_slice %1 {offsets = [8, 0], sizes = [1, 128], strides = [1, 1]} : vector<16x128xf32> to vector<1x128xf32>
    %119 = vector.broadcast %118 : vector<1x128xf32> to vector<32x128xf32>
    %120 = arith.addf %117, %119 : vector<32x128xf32>
    %121 = vector.extract_strided_slice %46 {offsets = [0, 0], sizes = [32, 32], strides = [1, 1]} : vector<32x128xf32> to vector<32x32xf32>
    %122 = arith.truncf %121 : vector<32x32xf32> to vector<32x32xbf16>
    %c160 = arith.constant 160 : index
    %c0_41 = arith.constant 0 : index
    %123 = vector.load %arg2[%c160, %c0_41] : memref<240x128xbf16, #tpu.memory_space<vmem>>, vector<32x128xbf16>
    %cst_42 = arith.constant dense<0.000000e+00> : vector<32x128xf32>
    %124 = tpu.matmul %122, %123, %cst_42 {dimension_numbers = #tpu.dot_dimension_numbers<[1], [0], [0], [1], [0, 0, 1, 1], [], []>} : vector<32x32xbf16>, vector<32x128xbf16>, vector<32x128xf32> -> vector<32x128xf32>
    %125 = vector.extract_strided_slice %83 {offsets = [0, 0], sizes = [32, 32], strides = [1, 1]} : vector<32x128xf32> to vector<32x32xf32>
    %126 = arith.truncf %125 : vector<32x32xf32> to vector<32x32xbf16>
    %c192 = arith.constant 192 : index
    %c0_43 = arith.constant 0 : index
    %127 = vector.load %arg2[%c192, %c0_43] : memref<240x128xbf16, #tpu.memory_space<vmem>>, vector<32x128xbf16>
    %cst_44 = arith.constant dense<0.000000e+00> : vector<32x128xf32>
    %128 = tpu.matmul %126, %127, %cst_44 {dimension_numbers = #tpu.dot_dimension_numbers<[1], [0], [0], [1], [0, 0, 1, 1], [], []>} : vector<32x32xbf16>, vector<32x128xbf16>, vector<32x128xf32> -> vector<32x128xf32>
    %129 = arith.addf %124, %128 : vector<32x128xf32>
    %130 = vector.extract_strided_slice %120 {offsets = [0, 0], sizes = [32, 16], strides = [1, 1]} : vector<32x128xf32> to vector<32x16xf32>
    %131 = arith.truncf %130 : vector<32x16xf32> to vector<32x16xbf16>
    %c224 = arith.constant 224 : index
    %c0_45 = arith.constant 0 : index
    %132 = vector.load %arg2[%c224, %c0_45] : memref<240x128xbf16, #tpu.memory_space<vmem>>, vector<16x128xbf16>
    %cst_46 = arith.constant dense<0.000000e+00> : vector<32x128xf32>
    %133 = tpu.matmul %131, %132, %cst_46 {dimension_numbers = #tpu.dot_dimension_numbers<[1], [0], [0], [1], [0, 0, 1, 1], [], []>} : vector<32x16xbf16>, vector<16x128xbf16>, vector<32x128xf32> -> vector<32x128xf32>
    %134 = arith.addf %129, %133 : vector<32x128xf32>
    %135 = vector.extract_strided_slice %1 {offsets = [9, 0], sizes = [1, 128], strides = [1, 1]} : vector<16x128xf32> to vector<1x128xf32>
    %136 = vector.broadcast %135 : vector<1x128xf32> to vector<32x128xf32>
    %137 = arith.addf %134, %136 : vector<32x128xf32>
    %cst_47 = arith.constant 0.000000e+00 : f32
    %138 = vector.broadcast %cst_47 : f32 to vector<32x128xf32>
    %139 = arith.maximumf %137, %138 : vector<32x128xf32>
    %c0_48 = arith.constant 0 : index
    %c0_49 = arith.constant 0 : index
    %140 = vector.load %arg4[%c0_48, %c0_49] : memref<32x128xf32, #tpu.memory_space<vmem>>, vector<32x128xf32>
    tpu.vector_store %arg4[%c0_48, %c0_49], %139 {strides = array<i32>} : memref<32x128xf32, #tpu.memory_space<vmem>>, vector<32x128xf32>,
    return
  }
}

</mosaic_0001>

<llo_original>
// kernel: tpu_custom_call.1
$region0: #{tpu_custom_call.1}
  #allocation0 [shape = 'u32[]', space=smem, size = 0x4, offset = 0x4, fixed_abs, tag = 'smem constant byte address 0x4 - core index']
  #allocation1 [shape = 'u32[144,128]{1,0:T(1,128)}', space=vmem, size = 0x12000, scoped, tag = 'internal scratch']
  %s0 = inlined_call_operand.hbm [shape: f32[32,128], index: 0, kind: input, shape index: {}]
  %s1 = inlined_call_operand.hbm [shape: bf16[32,32], index: 1, kind: input, shape index: {}]
  %s2 = inlined_call_operand.hbm [shape: bf16[240,128], index: 2, kind: input, shape index: {}]
  %s3 = inlined_call_operand.hbm [shape: f32[16,128], index: 3, kind: input, shape index: {}]
  %s4 = inlined_call_operand.hbm [shape: f32[32,128], index: 4, kind: output, shape index: {}]
  %s5 = sld [smem:[#allocation0]]
  $region42: #{tpu_custom_call.1} parent=0
    _
  %s7 = ssub.s32 1, %s5
  %s8 = scalar_select 0, %s7, %s5
  $region1: #{tpu_custom_call.1} parent=0
    #allocation2 [shape = 'u8[16384]{0}', space=vmem, size = 0x4000, scoped, tag = 'input window, operand 0, single buffered']
    #allocation3 [shape = 's32[1]{0}', space=sflag, size = 0x4, scoped, tag = 'scoped memory for tpu_custom_call.1']
    #allocation4 [shape = 's32[1]{0}', space=sflag, size = 0x4, scoped, tag = 'scoped memory for tpu_custom_call.1']
    #allocation5 [shape = 'u8[8192]{0}', space=vmem, size = 0x2000, scoped, tag = 'input window, operand 1, single buffered']
    #allocation6 [shape = 's32[1]{0}', space=sflag, size = 0x4, scoped, tag = 'scoped memory for tpu_custom_call.1']
    #allocation7 [shape = 'u8[61440]{0}', space=vmem, size = 0xf000, scoped, tag = 'input window, operand 2, single buffered']
    #allocation8 [shape = 'u8[8192]{0}', space=vmem, size = 0x2000, scoped, tag = 'input window, operand 3, single buffered']
    #allocation9 [shape = 's32[1]{0}', space=sflag, size = 0x4, scoped, tag = 'scoped memory for tpu_custom_call.1']
    #allocation10 [shape = 'u8[16384]{0}', space=vmem, size = 0x4000, scoped, tag = 'output window, operand 0, single buffered']
    %9 = vsyncpa [#allocation3], 0
    %10 = vsyncpa [#allocation6], 0
    %11 = vsyncpa [#allocation9], 0
    %12 = vsyncpa [#allocation4], 0
    // Predicated region
    $region2: #{tpu_custom_call.1} parent=1 // pred_check
      _
    $region3: #{tpu_custom_call.1} parent=1 // pred_check_branch
      %14 = sbr.rel (0) target = $region5
    $region4: #{tpu_custom_call.1} parent=1 // pred_region
      %s16 = ssub.s32 512, 512
      %17 = vsyncadd [#allocation3], %s16
      %s18 = sshll.u32 [#allocation2], 4
      %s19 = int_to_ptr.vmem [resolvable:$true] %s18
      %24 = dma.hbm_to_vmem [thread:$0]  %s0, 512, %s19, [#allocation3], 128, 128, 8
    $region5: #{tpu_custom_call.1} parent=1 // pred_fallthru
      _
    // Predicated region
    $region6: #{tpu_custom_call.1} parent=1 // pred_check
      _
    $region7: #{tpu_custom_call.1} parent=1 // pred_check_branch
      %26 = sbr.rel (0) target = $region9
    $region8: #{tpu_custom_call.1} parent=1 // pred_region
      %s28 = ssub.s32 256, 256
      %29 = vsyncadd [#allocation6], %s28
      %s30 = sshll.u32 [#allocation5], 4
      %s31 = int_to_ptr.vmem [resolvable:$true] %s30
      %36 = dma.hbm_to_vmem [thread:$0]  %s1, 256, %s31, [#allocation6], 64, 64, 4
    $region9: #{tpu_custom_call.1} parent=1 // pred_fallthru
      _
    // Predicated region
    $region10: #{tpu_custom_call.1} parent=1 // pred_check
      _
    $region11: #{tpu_custom_call.1} parent=1 // pred_check_branch
      %38 = sbr.rel (0) target = $region13
    $region12: #{tpu_custom_call.1} parent=1 // pred_region
      %s40 = ssub.s32 1920, 1920
      %41 = vsyncadd [#allocation6], %s40
      %s42 = sshll.u32 [#allocation7], 4
      %s43 = int_to_ptr.vmem [resolvable:$true] %s42
      %48 = dma.hbm_to_vmem [thread:$0]  %s2, 1920, %s43, [#allocation6], 64, 64, 4
    $region13: #{tpu_custom_call.1} parent=1 // pred_fallthru
      _
    // Predicated region
    $region14: #{tpu_custom_call.1} parent=1 // pred_check
      _
    $region15: #{tpu_custom_call.1} parent=1 // pred_check_branch
      %50 = sbr.rel (0) target = $region17
    $region16: #{tpu_custom_call.1} parent=1 // pred_region
      %s52 = ssub.s32 256, 256
      %53 = vsyncadd [#allocation9], %s52
      %s54 = sshll.u32 [#allocation8], 4
      %s55 = int_to_ptr.vmem [resolvable:$true] %s54
      %60 = dma.hbm_to_vmem [thread:$0]  %s3, 256, %s55, [#allocation9], 128, 128, 8
    $region17: #{tpu_custom_call.1} parent=1 // pred_fallthru
      _
    // Predicated region
    $region18: #{tpu_custom_call.1} parent=1 // pred_check
      _
    $region19: #{tpu_custom_call.1} parent=1 // pred_check_branch
      %62 = sbr.rel (0) target = $region21
    $region20: #{tpu_custom_call.1} parent=1 // pred_region
      %63 = dma.done [#allocation3], 512
    $region21: #{tpu_custom_call.1} parent=1 // pred_fallthru
      _
    // Predicated region
    $region22: #{tpu_custom_call.1} parent=1 // pred_check
      _
    $region23: #{tpu_custom_call.1} parent=1 // pred_check_branch
      %65 = sbr.rel (0) target = $region25
    $region24: #{tpu_custom_call.1} parent=1 // pred_region
      %66 = dma.done [#allocation6], 256
    $region25: #{tpu_custom_call.1} parent=1 // pred_fallthru
      _
    // Predicated region
    $region26: #{tpu_custom_call.1} parent=1 // pred_check
      _
    $region27: #{tpu_custom_call.1} parent=1 // pred_check_branch
      %68 = sbr.rel (0) target = $region29
    $region28: #{tpu_custom_call.1} parent=1 // pred_region
      %69 = dma.done [#allocation6], 1920
    $region29: #{tpu_custom_call.1} parent=1 // pred_fallthru
      _
    // Predicated region
    $region30: #{tpu_custom_call.1} parent=1 // pred_check
      _
    $region31: #{tpu_custom_call.1} parent=1 // pred_check_branch
      %71 = sbr.rel (0) target = $region33
    $region32: #{tpu_custom_call.1} parent=1 // pred_region
      %72 = dma.done [#allocation9], 256
    $region33: #{tpu_custom_call.1} parent=1 // pred_fallthru
      _
    %v74 = vld [vmem:[#allocation5] sm:$0xf]
    %v75 = vld [vmem:[#allocation5 + $0x4] sm:$0xf]
    %v76 = vld [vmem:[#allocation5 + $0x8] sm:$0xf]
    %v77 = vld [vmem:[#allocation5 + $0xc] sm:$0xf]
    %v78 = vld [vmem:[#allocation8] sm:$0xff]
    %v79 = vld [vmem:[#allocation8 + $0x8] sm:$0xff]
    %v80 = vunpack.c.l.bf16 %v74
    %v81 = vunpack.c.l.bf16 %v75
    %v82 = vunpack.c.l.bf16 %v76
    %v83 = vunpack.c.l.bf16 %v77
    %vm84 = vcmask 261120
    %v85 = vsel %vm84, %v80, 0.0
    %86 = vadd.xlane.f32.xlu0 %v85
    %v87 = vpop.xlane.xlu0 %86
    %v88 = vsel %vm84, %v81, 0.0
    %89 = vadd.xlane.f32.xlu0 %v88
    %v90 = vpop.xlane.xlu0 %89
    %v91 = vsel %vm84, %v82, 0.0
    %92 = vadd.xlane.f32.xlu0 %v91
    %v93 = vpop.xlane.xlu0 %92
    %v94 = vsel %vm84, %v83, 0.0
    %95 = vadd.xlane.f32.xlu0 %v94
    %v96 = vpop.xlane.xlu0 %95
    %v97 = vmax.f32 %v87, 1.0
    %v98 = vmax.f32 %v90, 1.0
    %v99 = vmax.f32 %v93, 1.0
    %v100 = vmax.f32 %v96, 1.0
    %v101 = vrcp.pop %v97
    %v102 = vmul.f32 1.0, %v101
    %v103 = vrcp.pop %v98
    %v104 = vmul.f32 1.0, %v103
    %v105 = vrcp.pop %v99
    %v106 = vmul.f32 1.0, %v105
    %v107 = vrcp.pop %v100
    %v108 = vmul.f32 1.0, %v107
    %v109 = vld [vmem:[#allocation2] sm:$0xff]
    %v110 = vld [vmem:[#allocation2 + $0x8] sm:$0xff]
    %v111 = vld [vmem:[#allocation2 + $0x10] sm:$0xff]
    %v112 = vld [vmem:[#allocation2 + $0x18] sm:$0xff]
    %v113 = vpack.c.bf16 %v110, %v109
    %v114 = vpack.c.bf16 %v112, %v111
    %v119 = vunpack.c.l.b16 %v74
    %v120 = vunpack.c.l.b16 %v75
    %v121 = vunpack.c.l.b16 %v76
    %v122 = vunpack.c.l.b16 %v77
    %v123 = vpack.c.b16 %v120, %v119
    %v124 = vpack.c.b16 %v122, %v121
    %v126 = vsel %vm84, %v123, 0
    %v129 = vsel %vm84, %v124, 0
    %131 = vmatprep.subr.bf16.mxu0 0
    %132 = vmatpush1.bf16.msra.mxu0 %v113
    %133 = vmatprep.subr.bf16.mxu0 0
    %134 = vmatpush1.bf16.msra.mxu0 %v114
    %135 = vmatprep.subr.bf16.mxu0 0
    %136 = vmatpush1.bf16.msra.mxu0 0
    %137 = vmatprep.subr.bf16.mxu0 0
    %138 = vmatpush1.bf16.msra.mxu0 0
    %139 = vmatprep.subr.bf16.mxu0 0
    %140 = vmatpush1.bf16.msra.mxu0 0
    %141 = vmatprep.subr.bf16.mxu0 0
    %142 = vmatpush1.bf16.msra.mxu0 0
    %143 = vmatprep.subr.bf16.mxu0 0
    %144 = vmatpush1.bf16.msra.mxu0 0
    %145 = vmatprep.subr.bf16.mxu0 0
    %146 = vmatpush1.bf16.msra.mxu0 0
    %147 = vmatprep.subr.bf16.mxu0 0
    %148 = vmatpush1.bf16.msra.mxu0 0
    %149 = vmatprep.subr.bf16.mxu0 0
    %150 = vmatpush1.bf16.msra.mxu0 0
    %151 = vmatprep.subr.bf16.mxu0 0
    %152 = vmatpush1.bf16.msra.mxu0 0
    %153 = vmatprep.subr.bf16.mxu0 0
    %154 = vmatpush1.bf16.msra.mxu0 0
    %155 = vmatprep.subr.bf16.mxu0 0
    %156 = vmatpush1.bf16.msra.mxu0 0
    %157 = vmatprep.subr.bf16.mxu0 0
    %158 = vmatpush1.bf16.msra.mxu0 0
    %159 = vmatprep.subr.bf16.mxu0 0
    %160 = vmatpush1.bf16.msra.mxu0 0
    %161 = vmatprep.subr.bf16.mxu0 0
    %162 = vmatpush1.bf16.msra.mxu0 0
    %163 = vmatprep.mubr.bf16.mxu0 0
    %164 = vmatmul.mubr.bf16.gmra.mrb[0].mxu0 %v126
    %v165 = vpop.f32.mrb[0].mxu0
    %v166 = vadd.f32 0.0, %v165
    %v167 = vpop.f32.mrb[0].mxu0
    %v168 = vpop.f32.mrb[0].mxu0
    %v169 = vadd.f32 0.0, %v168
    %v170 = vpop.f32.mrb[0].mxu0
    %171 = vmatprep.mubr.bf16.mxu0 0
    %172 = vmatmul.mubr.bf16.gmra.mrb[0].mxu0 %v129
    %v173 = vpop.f32.mrb[0].mxu0
    %v174 = vadd.f32 0.0, %v173
    %v175 = vpop.f32.mrb[0].mxu0
    %v176 = vpop.f32.mrb[0].mxu0
    %v177 = vadd.f32 0.0, %v176
    %v178 = vpop.f32.mrb[0].mxu0
    %179 = vdwg.mxu0
    %v180 = vmul.f32 %v166, %v102
    %v181 = vmul.f32 %v169, %v104
    %v182 = vmul.f32 %v174, %v106
    %v183 = vmul.f32 %v177, %v108
    %v184 = vpack.c.bf16 %v181, %v180
    %v185 = vpack.c.bf16 %v183, %v182
    %v186 = vld [vmem:[#allocation7] sm:$0xf]
    %v187 = vld [vmem:[#allocation7 + $0x4] sm:$0xf]
    %v188 = vld [vmem:[#allocation7 + $0x8] sm:$0xf]
    %v189 = vld [vmem:[#allocation7 + $0xc] sm:$0xf]
    %v192 = vunpack.c.l.b16 %v188
    %v193 = vunpack.c.l.b16 %v189
    %v194 = vpack.c.b16 %v193, %v192
    %vm196 = vcmask 130048
    %v198 = vsel %vm196, %v113, 0
    %v201 = vsel %vm196, %v114, 0
    %203 = vmatprep.subr.bf16.mxu0 0
    %204 = vmatpush1.bf16.msra.mxu0 %v194
    %205 = vmatprep.subr.bf16.mxu0 0
    %206 = vmatpush1.bf16.msra.mxu0 0
    %207 = vmatprep.subr.bf16.mxu0 0
    %208 = vmatpush1.bf16.msra.mxu0 0
    %209 = vmatprep.subr.bf16.mxu0 0
    %210 = vmatpush1.bf16.msra.mxu0 0
    %211 = vmatprep.subr.bf16.mxu0 0
    %212 = vmatpush1.bf16.msra.mxu0 0
    %213 = vmatprep.subr.bf16.mxu0 0
    %214 = vmatpush1.bf16.msra.mxu0 0
    %215 = vmatprep.subr.bf16.mxu0 0
    %216 = vmatpush1.bf16.msra.mxu0 0
    %217 = vmatprep.subr.bf16.mxu0 0
    %218 = vmatpush1.bf16.msra.mxu0 0
    %219 = vmatprep.subr.bf16.mxu0 0
    %220 = vmatpush1.bf16.msra.mxu0 0
    %221 = vmatprep.subr.bf16.mxu0 0
    %222 = vmatpush1.bf16.msra.mxu0 0
    %223 = vmatprep.subr.bf16.mxu0 0
    %224 = vmatpush1.bf16.msra.mxu0 0
    %225 = vmatprep.subr.bf16.mxu0 0
    %226 = vmatpush1.bf16.msra.mxu0 0
    %227 = vmatprep.subr.bf16.mxu0 0
    %228 = vmatpush1.bf16.msra.mxu0 0
    %229 = vmatprep.subr.bf16.mxu0 0
    %230 = vmatpush1.bf16.msra.mxu0 0
    %231 = vmatprep.subr.bf16.mxu0 0
    %232 = vmatpush1.bf16.msra.mxu0 0
    %233 = vmatprep.subr.bf16.mxu0 0
    %234 = vmatpush1.bf16.msra.mxu0 0
    %235 = vmatprep.mubr.bf16.mxu0 0
    %236 = vmatmul.mubr.bf16.gmra.mrb[0].mxu0 %v198
    %v237 = vpop.f32.mrb[0].mxu0
    %v238 = vadd.f32 0.0, %v237
    %v239 = vpop.f32.mrb[0].mxu0
    %v240 = vpop.f32.mrb[0].mxu0
    %v241 = vadd.f32 0.0, %v240
    %v242 = vpop.f32.mrb[0].mxu0
    %243 = vmatprep.mubr.bf16.mxu0 0
    %244 = vmatmul.mubr.bf16.gmra.mrb[0].mxu0 %v201
    %v245 = vpop.f32.mrb[0].mxu0
    %v246 = vadd.f32 0.0, %v245
    %v247 = vpop.f32.mrb[0].mxu0
    %v248 = vpop.f32.mrb[0].mxu0
    %v249 = vadd.f32 0.0, %v248
    %v250 = vpop.f32.mrb[0].mxu0
    %251 = vdwg.mxu0
    %v254 = vunpack.c.l.b16 %v186
    %v255 = vunpack.c.l.b16 %v187
    %v256 = vpack.c.b16 %v255, %v254
    %v259 = vsel %vm196, %v184, 0
    %v262 = vsel %vm196, %v185, 0
    %264 = vmatprep.subr.bf16.mxu0 0
    %265 = vmatpush1.bf16.msra.mxu0 %v256
    %266 = vmatprep.subr.bf16.mxu0 0
    %267 = vmatpush1.bf16.msra.mxu0 0
    %268 = vmatprep.subr.bf16.mxu0 0
    %269 = vmatpush1.bf16.msra.mxu0 0
    %270 = vmatprep.subr.bf16.mxu0 0
    %271 = vmatpush1.bf16.msra.mxu0 0
    %272 = vmatprep.subr.bf16.mxu0 0
    %273 = vmatpush1.bf16.msra.mxu0 0
    %274 = vmatprep.subr.bf16.mxu0 0
    %275 = vmatpush1.bf16.msra.mxu0 0
    %276 = vmatprep.subr.bf16.mxu0 0
    %277 = vmatpush1.bf16.msra.mxu0 0
    %278 = vmatprep.subr.bf16.mxu0 0
    %279 = vmatpush1.bf16.msra.mxu0 0
    %280 = vmatprep.subr.bf16.mxu0 0
    %281 = vmatpush1.bf16.msra.mxu0 0
    %282 = vmatprep.subr.bf16.mxu0 0
    %283 = vmatpush1.bf16.msra.mxu0 0
    %284 = vmatprep.subr.bf16.mxu0 0
    %285 = vmatpush1.bf16.msra.mxu0 0
    %286 = vmatprep.subr.bf16.mxu0 0
    %287 = vmatpush1.bf16.msra.mxu0 0
    %288 = vmatprep.subr.bf16.mxu0 0
    %289 = vmatpush1.bf16.msra.mxu0 0
    %290 = vmatprep.subr.bf16.mxu0 0
    %291 = vmatpush1.bf16.msra.mxu0 0
    %292 = vmatprep.subr.bf16.mxu0 0
    %293 = vmatpush1.bf16.msra.mxu0 0
    %294 = vmatprep.subr.bf16.mxu0 0
    %295 = vmatpush1.bf16.msra.mxu0 0
    %296 = vmatprep.mubr.bf16.mxu0 0
    %297 = vmatmul.mubr.bf16.gmra.mrb[0].mxu0 %v259
    %v298 = vpop.f32.mrb[0].mxu0
    %v299 = vadd.f32 %v238, %v298
    %v300 = vpop.f32.mrb[0].mxu0
    %v301 = vpop.f32.mrb[0].mxu0
    %v302 = vadd.f32 %v241, %v301
    %v303 = vpop.f32.mrb[0].mxu0
    %304 = vmatprep.mubr.bf16.mxu0 0
    %305 = vmatmul.mubr.bf16.gmra.mrb[0].mxu0 %v262
    %v306 = vpop.f32.mrb[0].mxu0
    %v307 = vadd.f32 %v246, %v306
    %v308 = vpop.f32.mrb[0].mxu0
    %v309 = vpop.f32.mrb[0].mxu0
    %v310 = vadd.f32 %v249, %v309
    %v311 = vpop.f32.mrb[0].mxu0
    %312 = vdwg.mxu0
    %v313 = vlaneseq
    %v314 = vshrl.u32 %v313, 7
    %v315 = vsub.s32 0, %v314
    %v316 = vrot.slane %v78, %v315
    %v317 = vadd.f32 %v299, %v316
    %v318 = vadd.f32 %v302, %v316
    %v319 = vadd.f32 %v307, %v316
    %v320 = vadd.f32 %v310, %v316
    %v321 = vmax.f32 %v317, 0.0
    %v322 = vmax.f32 %v318, 0.0
    %v323 = vmax.f32 %v319, 0.0
    %v324 = vmax.f32 %v320, 0.0
    %v325 = vadd.f32 %v321, %v322
    %v326 = vadd.f32 %v325, %v323
    %v327 = vadd.f32 %v326, %v324
    %v328 = vrot.slane %v327, 4
    %v329 = vadd.f32 %v327, %v328
    %v330 = vrot.slane %v329, 2
    %v331 = vadd.f32 %v329, %v330
    %v332 = vrot.slane %v331, 1
    %v333 = vadd.f32 %v331, %v332
    %v334 = vmul.f32 %v333, 0.03125
    %v335 = vsub.f32 %v321, %v334
    %v336 = vsub.f32 %v322, %v334
    %v337 = vsub.f32 %v323, %v334
    %v338 = vsub.f32 %v324, %v334
    %v339 = vmul.f32 %v335, %v335
    %v340 = vmul.f32 %v336, %v336
    %v341 = vmul.f32 %v337, %v337
    %v342 = vmul.f32 %v338, %v338
    %v343 = vadd.f32 %v339, %v340
    %v344 = vadd.f32 %v343, %v341
    %v345 = vadd.f32 %v344, %v342
    %v346 = vrot.slane %v345, 4
    %v347 = vadd.f32 %v345, %v346
    %v348 = vrot.slane %v347, 2
    %v349 = vadd.f32 %v347, %v348
    %v350 = vrot.slane %v349, 1
    %v351 = vadd.f32 %v349, %v350
    %v352 = vmul.f32 %v351, 0.03125
    %v353 = vadd.f32 %v352, 1e-05
    %v354 = vrsqrt.pop %v353
    %v355 = vmul.f32 %v78, %v354
    %v356 = vlaneseq
    %v357 = vshrl.u32 %v356, 7
    %v358 = vsub.s32 1, %v357
    %v359 = vrot.slane %v355, %v358
    %v360 = vmul.f32 %v335, %v359
    %v361 = vmul.f32 %v336, %v359
    %v362 = vmul.f32 %v337, %v359
    %v363 = vmul.f32 %v338, %v359
    %v364 = vlaneseq
    %v365 = vshrl.u32 %v364, 7
    %v366 = vsub.s32 2, %v365
    %v367 = vrot.slane %v78, %v366
    %v368 = vadd.f32 %v360, %v367
    %v369 = vadd.f32 %v361, %v367
    %v370 = vadd.f32 %v362, %v367
    %v371 = vadd.f32 %v363, %v367
    %v372 = vpack.c.bf16 %v369, %v368
    %v373 = vpack.c.bf16 %v371, %v370
    %374 = vmatprep.subr.bf16.mxu0 0
    %375 = vmatpush1.bf16.msra.mxu0 %v372
    %376 = vmatprep.subr.bf16.mxu0 0
    %377 = vmatpush1.bf16.msra.mxu0 %v373
    %378 = vmatprep.subr.bf16.mxu0 0
    %379 = vmatpush1.bf16.msra.mxu0 0
    %380 = vmatprep.subr.bf16.mxu0 0
    %381 = vmatpush1.bf16.msra.mxu0 0
    %382 = vmatprep.subr.bf16.mxu0 0
    %383 = vmatpush1.bf16.msra.mxu0 0
    %384 = vmatprep.subr.bf16.mxu0 0
    %385 = vmatpush1.bf16.msra.mxu0 0
    %386 = vmatprep.subr.bf16.mxu0 0
    %387 = vmatpush1.bf16.msra.mxu0 0
    %388 = vmatprep.subr.bf16.mxu0 0
    %389 = vmatpush1.bf16.msra.mxu0 0
    %390 = vmatprep.subr.bf16.mxu0 0
    %391 = vmatpush1.bf16.msra.mxu0 0
    %392 = vmatprep.subr.bf16.mxu0 0
    %393 = vmatpush1.bf16.msra.mxu0 0
    %394 = vmatprep.subr.bf16.mxu0 0
    %395 = vmatpush1.bf16.msra.mxu0 0
    %396 = vmatprep.subr.bf16.mxu0 0
    %397 = vmatpush1.bf16.msra.mxu0 0
    %398 = vmatprep.subr.bf16.mxu0 0
    %399 = vmatpush1.bf16.msra.mxu0 0
    %400 = vmatprep.subr.bf16.mxu0 0
    %401 = vmatpush1.bf16.msra.mxu0 0
    %402 = vmatprep.subr.bf16.mxu0 0
    %403 = vmatpush1.bf16.msra.mxu0 0
    %404 = vmatprep.subr.bf16.mxu0 0
    %405 = vmatpush1.bf16.msra.mxu0 0
    %406 = vmatprep.mubr.bf16.mxu0 0
    %407 = vmatmul.mubr.bf16.gmra.mrb[0].mxu0 %v126
    %v408 = vpop.f32.mrb[0].mxu0
    %v409 = vadd.f32 0.0, %v408
    %v410 = vpop.f32.mrb[0].mxu0
    %v411 = vpop.f32.mrb[0].mxu0
    %v412 = vadd.f32 0.0, %v411
    %v413 = vpop.f32.mrb[0].mxu0
    %414 = vmatprep.mubr.bf16.mxu0 0
    %415 = vmatmul.mubr.bf16.gmra.mrb[0].mxu0 %v129
    %v416 = vpop.f32.mrb[0].mxu0
    %v417 = vadd.f32 0.0, %v416
    %v418 = vpop.f32.mrb[0].mxu0
    %v419 = vpop.f32.mrb[0].mxu0
    %v420 = vadd.f32 0.0, %v419
    %v421 = vpop.f32.mrb[0].mxu0
    %422 = vdwg.mxu0
    %v423 = vmul.f32 %v409, %v102
    %v424 = vmul.f32 %v412, %v104
    %v425 = vmul.f32 %v417, %v106
    %v426 = vmul.f32 %v420, %v108
    %v427 = vpack.c.bf16 %v424, %v423
    %v428 = vpack.c.bf16 %v426, %v425
    %v429 = vld [vmem:[#allocation7 + $0x10] sm:$0xf]
    %v430 = vld [vmem:[#allocation7 + $0x14] sm:$0xf]
    %v431 = vld [vmem:[#allocation7 + $0x18] sm:$0xf]
    %v432 = vld [vmem:[#allocation7 + $0x1c] sm:$0xf]
    %v433 = vld [vmem:[#allocation7 + $0x20] sm:$0xf]
    %v434 = vld [vmem:[#allocation7 + $0x24] sm:$0xf]
    %v435 = vld [vmem:[#allocation7 + $0x28] sm:$0xf]
    %v436 = vld [vmem:[#allocation7 + $0x2c] sm:$0xf]
    %v441 = vunpack.c.l.b16 %v433
    %v442 = vunpack.c.l.b16 %v434
    %v443 = vunpack.c.l.b16 %v435
    %v444 = vunpack.c.l.b16 %v436
    %v445 = vpack.c.b16 %v442, %v441
    %v446 = vpack.c.b16 %v444, %v443
    %v450 = vsel %vm84, %v372, 0
    %v453 = vsel %vm84, %v373, 0
    %455 = vmatprep.subr.bf16.mxu0 0
    %456 = vmatpush1.bf16.msra.mxu0 %v445
    %457 = vmatprep.subr.bf16.mxu0 0
    %458 = vmatpush1.bf16.msra.mxu0 %v446
    %459 = vmatprep.subr.bf16.mxu0 0
    %460 = vmatpush1.bf16.msra.mxu0 0
    %461 = vmatprep.subr.bf16.mxu0 0
    %462 = vmatpush1.bf16.msra.mxu0 0
    %463 = vmatprep.subr.bf16.mxu0 0
    %464 = vmatpush1.bf16.msra.mxu0 0
    %465 = vmatprep.subr.bf16.mxu0 0
    %466 = vmatpush1.bf16.msra.mxu0 0
    %467 = vmatprep.subr.bf16.mxu0 0
    %468 = vmatpush1.bf16.msra.mxu0 0
    %469 = vmatprep.subr.bf16.mxu0 0
    %470 = vmatpush1.bf16.msra.mxu0 0
    %471 = vmatprep.subr.bf16.mxu0 0
    %472 = vmatpush1.bf16.msra.mxu0 0
    %473 = vmatprep.subr.bf16.mxu0 0
    %474 = vmatpush1.bf16.msra.mxu0 0
    %475 = vmatprep.subr.bf16.mxu0 0
    %476 = vmatpush1.bf16.msra.mxu0 0
    %477 = vmatprep.subr.bf16.mxu0 0
    %478 = vmatpush1.bf16.msra.mxu0 0
    %479 = vmatprep.subr.bf16.mxu0 0
    %480 = vmatpush1.bf16.msra.mxu0 0
    %481 = vmatprep.subr.bf16.mxu0 0
    %482 = vmatpush1.bf16.msra.mxu0 0
    %483 = vmatprep.subr.bf16.mxu0 0
    %484 = vmatpush1.bf16.msra.mxu0 0
    %485 = vmatprep.subr.bf16.mxu0 0
    %486 = vmatpush1.bf16.msra.mxu0 0
    %487 = vmatprep.mubr.bf16.mxu0 0
    %488 = vmatmul.mubr.bf16.gmra.mrb[0].mxu0 %v450
    %v489 = vpop.f32.mrb[0].mxu0
    %v490 = vadd.f32 0.0, %v489
    %v491 = vpop.f32.mrb[0].mxu0
    %v492 = vpop.f32.mrb[0].mxu0
    %v493 = vadd.f32 0.0, %v492
    %v494 = vpop.f32.mrb[0].mxu0
    %495 = vmatprep.mubr.bf16.mxu0 0
    %496 = vmatmul.mubr.bf16.gmra.mrb[0].mxu0 %v453
    %v497 = vpop.f32.mrb[0].mxu0
    %v498 = vadd.f32 0.0, %v497
    %v499 = vpop.f32.mrb[0].mxu0
    %v500 = vpop.f32.mrb[0].mxu0
    %v501 = vadd.f32 0.0, %v500
    %v502 = vpop.f32.mrb[0].mxu0
    %503 = vdwg.mxu0
    %v508 = vunpack.c.l.b16 %v429
    %v509 = vunpack.c.l.b16 %v430
    %v510 = vunpack.c.l.b16 %v431
    %v511 = vunpack.c.l.b16 %v432
    %v512 = vpack.c.b16 %v509, %v508
    %v513 = vpack.c.b16 %v511, %v510
    %v517 = vsel %vm84, %v427, 0
    %v520 = vsel %vm84, %v428, 0
    %522 = vmatprep.subr.bf16.mxu0 0
    %523 = vmatpush1.bf16.msra.mxu0 %v512
    %524 = vmatprep.subr.bf16.mxu0 0
    %525 = vmatpush1.bf16.msra.mxu0 %v513
    %526 = vmatprep.subr.bf16.mxu0 0
    %527 = vmatpush1.bf16.msra.mxu0 0
    %528 = vmatprep.subr.bf16.mxu0 0
    %529 = vmatpush1.bf16.msra.mxu0 0
    %530 = vmatprep.subr.bf16.mxu0 0
    %531 = vmatpush1.bf16.msra.mxu0 0
    %532 = vmatprep.subr.bf16.mxu0 0
    %533 = vmatpush1.bf16.msra.mxu0 0
    %534 = vmatprep.subr.bf16.mxu0 0
    %535 = vmatpush1.bf16.msra.mxu0 0
    %536 = vmatprep.subr.bf16.mxu0 0
    %537 = vmatpush1.bf16.msra.mxu0 0
    %538 = vmatprep.subr.bf16.mxu0 0
    %539 = vmatpush1.bf16.msra.mxu0 0
    %540 = vmatprep.subr.bf16.mxu0 0
    %541 = vmatpush1.bf16.msra.mxu0 0
    %542 = vmatprep.subr.bf16.mxu0 0
    %543 = vmatpush1.bf16.msra.mxu0 0
    %544 = vmatprep.subr.bf16.mxu0 0
    %545 = vmatpush1.bf16.msra.mxu0 0
    %546 = vmatprep.subr.bf16.mxu0 0
    %547 = vmatpush1.bf16.msra.mxu0 0
    %548 = vmatprep.subr.bf16.mxu0 0
    %549 = vmatpush1.bf16.msra.mxu0 0
    %550 = vmatprep.subr.bf16.mxu0 0
    %551 = vmatpush1.bf16.msra.mxu0 0
    %552 = vmatprep.subr.bf16.mxu0 0
    %553 = vmatpush1.bf16.msra.mxu0 0
    %554 = vmatprep.mubr.bf16.mxu0 0
    %555 = vmatmul.mubr.bf16.gmra.mrb[0].mxu0 %v517
    %v556 = vpop.f32.mrb[0].mxu0
    %v557 = vadd.f32 %v490, %v556
    %v558 = vpop.f32.mrb[0].mxu0
    %v559 = vpop.f32.mrb[0].mxu0
    %v560 = vadd.f32 %v493, %v559
    %v561 = vpop.f32.mrb[0].mxu0
    %562 = vmatprep.mubr.bf16.mxu0 0
    %563 = vmatmul.mubr.bf16.gmra.mrb[0].mxu0 %v520
    %v564 = vpop.f32.mrb[0].mxu0
    %v565 = vadd.f32 %v498, %v564
    %v566 = vpop.f32.mrb[0].mxu0
    %v567 = vpop.f32.mrb[0].mxu0
    %v568 = vadd.f32 %v501, %v567
    %v569 = vpop.f32.mrb[0].mxu0
    %570 = vdwg.mxu0
    %v571 = vlaneseq
    %v572 = vshrl.u32 %v571, 7
    %v573 = vsub.s32 3, %v572
    %v574 = vrot.slane %v78, %v573
    %v575 = vadd.f32 %v557, %v574
    %v576 = vadd.f32 %v560, %v574
    %v577 = vadd.f32 %v565, %v574
    %v578 = vadd.f32 %v568, %v574
    %v579 = vmax.f32 %v575, 0.0
    %v580 = vmax.f32 %v576, 0.0
    %v581 = vmax.f32 %v577, 0.0
    %v582 = vmax.f32 %v578, 0.0
    %v583 = vadd.f32 %v579, %v580
    %v584 = vadd.f32 %v583, %v581
    %v585 = vadd.f32 %v584, %v582
    %v586 = vrot.slane %v585, 4
    %v587 = vadd.f32 %v585, %v586
    %v588 = vrot.slane %v587, 2
    %v589 = vadd.f32 %v587, %v588
    %v590 = vrot.slane %v589, 1
    %v591 = vadd.f32 %v589, %v590
    %v592 = vmul.f32 %v591, 0.03125
    %v593 = vsub.f32 %v579, %v592
    %v594 = vsub.f32 %v580, %v592
    %v595 = vsub.f32 %v581, %v592
    %v596 = vsub.f32 %v582, %v592
    %v597 = vmul.f32 %v593, %v593
    %v598 = vmul.f32 %v594, %v594
    %v599 = vmul.f32 %v595, %v595
    %v600 = vmul.f32 %v596, %v596
    %v601 = vadd.f32 %v597, %v598
    %v602 = vadd.f32 %v601, %v599
    %v603 = vadd.f32 %v602, %v600
    %v604 = vrot.slane %v603, 4
    %v605 = vadd.f32 %v603, %v604
    %v606 = vrot.slane %v605, 2
    %v607 = vadd.f32 %v605, %v606
    %v608 = vrot.slane %v607, 1
    %v609 = vadd.f32 %v607, %v608
    %v610 = vmul.f32 %v609, 0.03125
    %v611 = vadd.f32 %v610, 1e-05
    %v612 = vrsqrt.pop %v611
    %v613 = vmul.f32 %v78, %v612
    %v614 = vlaneseq
    %v615 = vshrl.u32 %v614, 7
    %v616 = vsub.s32 4, %v615
    %v617 = vrot.slane %v613, %v616
    %v618 = vmul.f32 %v593, %v617
    %v619 = vmul.f32 %v594, %v617
    %v620 = vmul.f32 %v595, %v617
    %v621 = vmul.f32 %v596, %v617
    %v622 = vlaneseq
    %v623 = vshrl.u32 %v622, 7
    %v624 = vsub.s32 5, %v623
    %v625 = vrot.slane %v78, %v624
    %v626 = vadd.f32 %v618, %v625
    %v627 = vadd.f32 %v619, %v625
    %v628 = vadd.f32 %v620, %v625
    %v629 = vadd.f32 %v621, %v625
    %v630 = vpack.c.bf16 %v627, %v626
    %v631 = vpack.c.bf16 %v629, %v628
    %632 = vmatprep.subr.bf16.mxu0 0
    %633 = vmatpush1.bf16.msra.mxu0 %v630
    %634 = vmatprep.subr.bf16.mxu0 0
    %635 = vmatpush1.bf16.msra.mxu0 %v631
    %636 = vmatprep.subr.bf16.mxu0 0
    %637 = vmatpush1.bf16.msra.mxu0 0
    %638 = vmatprep.subr.bf16.mxu0 0
    %639 = vmatpush1.bf16.msra.mxu0 0
    %640 = vmatprep.subr.bf16.mxu0 0
    %641 = vmatpush1.bf16.msra.mxu0 0
    %642 = vmatprep.subr.bf16.mxu0 0
    %643 = vmatpush1.bf16.msra.mxu0 0
    %644 = vmatprep.subr.bf16.mxu0 0
    %645 = vmatpush1.bf16.msra.mxu0 0
    %646 = vmatprep.subr.bf16.mxu0 0
    %647 = vmatpush1.bf16.msra.mxu0 0
    %648 = vmatprep.subr.bf16.mxu0 0
    %649 = vmatpush1.bf16.msra.mxu0 0
    %650 = vmatprep.subr.bf16.mxu0 0
    %651 = vmatpush1.bf16.msra.mxu0 0
    %652 = vmatprep.subr.bf16.mxu0 0
    %653 = vmatpush1.bf16.msra.mxu0 0
    %654 = vmatprep.subr.bf16.mxu0 0
    %655 = vmatpush1.bf16.msra.mxu0 0
    %656 = vmatprep.subr.bf16.mxu0 0
    %657 = vmatpush1.bf16.msra.mxu0 0
    %658 = vmatprep.subr.bf16.mxu0 0
    %659 = vmatpush1.bf16.msra.mxu0 0
    %660 = vmatprep.subr.bf16.mxu0 0
    %661 = vmatpush1.bf16.msra.mxu0 0
    %662 = vmatprep.subr.bf16.mxu0 0
    %663 = vmatpush1.bf16.msra.mxu0 0
    %664 = vmatprep.mubr.bf16.mxu0 0
    %665 = vmatmul.mubr.bf16.gmra.mrb[0].mxu0 %v126
    %v666 = vpop.f32.mrb[0].mxu0
    %v667 = vadd.f32 0.0, %v666
    %v668 = vpop.f32.mrb[0].mxu0
    %v669 = vpop.f32.mrb[0].mxu0
    %v670 = vadd.f32 0.0, %v669
    %v671 = vpop.f32.mrb[0].mxu0
    %672 = vmatprep.mubr.bf16.mxu0 0
    %673 = vmatmul.mubr.bf16.gmra.mrb[0].mxu0 %v129
    %v674 = vpop.f32.mrb[0].mxu0
    %v675 = vadd.f32 0.0, %v674
    %v676 = vpop.f32.mrb[0].mxu0
    %v677 = vpop.f32.mrb[0].mxu0
    %v678 = vadd.f32 0.0, %v677
    %v679 = vpop.f32.mrb[0].mxu0
    %680 = vdwg.mxu0
    %v681 = vmul.f32 %v667, %v102
    %v682 = vmul.f32 %v670, %v104
    %v683 = vmul.f32 %v675, %v106
    %v684 = vmul.f32 %v678, %v108
    %v685 = vpack.c.bf16 %v682, %v681
    %v686 = vpack.c.bf16 %v684, %v683
    %v687 = vld [vmem:[#allocation7 + $0x30] sm:$0xf]
    %v688 = vld [vmem:[#allocation7 + $0x34] sm:$0xf]
    %v689 = vld [vmem:[#allocation7 + $0x38] sm:$0xf]
    %v690 = vld [vmem:[#allocation7 + $0x3c] sm:$0xf]
    %v691 = vld [vmem:[#allocation7 + $0x40] sm:$0xf]
    %v692 = vld [vmem:[#allocation7 + $0x44] sm:$0xf]
    %v693 = vld [vmem:[#allocation7 + $0x48] sm:$0xf]
    %v694 = vld [vmem:[#allocation7 + $0x4c] sm:$0xf]
    %v699 = vunpack.c.l.b16 %v691
    %v700 = vunpack.c.l.b16 %v692
    %v701 = vunpack.c.l.b16 %v693
    %v702 = vunpack.c.l.b16 %v694
    %v703 = vpack.c.b16 %v700, %v699
    %v704 = vpack.c.b16 %v702, %v701
    %v708 = vsel %vm84, %v630, 0
    %v711 = vsel %vm84, %v631, 0
    %713 = vmatprep.subr.bf16.mxu0 0
    %714 = vmatpush1.bf16.msra.mxu0 %v703
    %715 = vmatprep.subr.bf16.mxu0 0
    %716 = vmatpush1.bf16.msra.mxu0 %v704
    %717 = vmatprep.subr.bf16.mxu0 0
    %718 = vmatpush1.bf16.msra.mxu0 0
    %719 = vmatprep.subr.bf16.mxu0 0
    %720 = vmatpush1.bf16.msra.mxu0 0
    %721 = vmatprep.subr.bf16.mxu0 0
    %722 = vmatpush1.bf16.msra.mxu0 0
    %723 = vmatprep.subr.bf16.mxu0 0
    %724 = vmatpush1.bf16.msra.mxu0 0
    %725 = vmatprep.subr.bf16.mxu0 0
    %726 = vmatpush1.bf16.msra.mxu0 0
    %727 = vmatprep.subr.bf16.mxu0 0
    %728 = vmatpush1.bf16.msra.mxu0 0
    %729 = vmatprep.subr.bf16.mxu0 0
    %730 = vmatpush1.bf16.msra.mxu0 0
    %731 = vmatprep.subr.bf16.mxu0 0
    %732 = vmatpush1.bf16.msra.mxu0 0
    %733 = vmatprep.subr.bf16.mxu0 0
    %734 = vmatpush1.bf16.msra.mxu0 0
    %735 = vmatprep.subr.bf16.mxu0 0
    %736 = vmatpush1.bf16.msra.mxu0 0
    %737 = vmatprep.subr.bf16.mxu0 0
    %738 = vmatpush1.bf16.msra.mxu0 0
    %739 = vmatprep.subr.bf16.mxu0 0
    %740 = vmatpush1.bf16.msra.mxu0 0
    %741 = vmatprep.subr.bf16.mxu0 0
    %742 = vmatpush1.bf16.msra.mxu0 0
    %743 = vmatprep.subr.bf16.mxu0 0
    %744 = vmatpush1.bf16.msra.mxu0 0
    %745 = vmatprep.mubr.bf16.mxu0 0
    %746 = vmatmul.mubr.bf16.gmra.mrb[0].mxu0 %v708
    %v747 = vpop.f32.mrb[0].mxu0
    %v748 = vadd.f32 0.0, %v747
    %v749 = vpop.f32.mrb[0].mxu0
    %v750 = vpop.f32.mrb[0].mxu0
    %v751 = vadd.f32 0.0, %v750
    %v752 = vpop.f32.mrb[0].mxu0
    %753 = vmatprep.mubr.bf16.mxu0 0
    %754 = vmatmul.mubr.bf16.gmra.mrb[0].mxu0 %v711
    %v755 = vpop.f32.mrb[0].mxu0
    %v756 = vadd.f32 0.0, %v755
    %v757 = vpop.f32.mrb[0].mxu0
    %v758 = vpop.f32.mrb[0].mxu0
    %v759 = vadd.f32 0.0, %v758
    %v760 = vpop.f32.mrb[0].mxu0
    %761 = vdwg.mxu0
    %v766 = vunpack.c.l.b16 %v687
    %v767 = vunpack.c.l.b16 %v688
    %v768 = vunpack.c.l.b16 %v689
    %v769 = vunpack.c.l.b16 %v690
    %v770 = vpack.c.b16 %v767, %v766
    %v771 = vpack.c.b16 %v769, %v768
    %v775 = vsel %vm84, %v685, 0
    %v778 = vsel %vm84, %v686, 0
    %780 = vmatprep.subr.bf16.mxu0 0
    %781 = vmatpush1.bf16.msra.mxu0 %v770
    %782 = vmatprep.subr.bf16.mxu0 0
    %783 = vmatpush1.bf16.msra.mxu0 %v771
    %784 = vmatprep.subr.bf16.mxu0 0
    %785 = vmatpush1.bf16.msra.mxu0 0
    %786 = vmatprep.subr.bf16.mxu0 0
    %787 = vmatpush1.bf16.msra.mxu0 0
    %788 = vmatprep.subr.bf16.mxu0 0
    %789 = vmatpush1.bf16.msra.mxu0 0
    %790 = vmatprep.subr.bf16.mxu0 0
    %791 = vmatpush1.bf16.msra.mxu0 0
    %792 = vmatprep.subr.bf16.mxu0 0
    %793 = vmatpush1.bf16.msra.mxu0 0
    %794 = vmatprep.subr.bf16.mxu0 0
    %795 = vmatpush1.bf16.msra.mxu0 0
    %796 = vmatprep.subr.bf16.mxu0 0
    %797 = vmatpush1.bf16.msra.mxu0 0
    %798 = vmatprep.subr.bf16.mxu0 0
    %799 = vmatpush1.bf16.msra.mxu0 0
    %800 = vmatprep.subr.bf16.mxu0 0
    %801 = vmatpush1.bf16.msra.mxu0 0
    %802 = vmatprep.subr.bf16.mxu0 0
    %803 = vmatpush1.bf16.msra.mxu0 0
    %804 = vmatprep.subr.bf16.mxu0 0
    %805 = vmatpush1.bf16.msra.mxu0 0
    %806 = vmatprep.subr.bf16.mxu0 0
    %807 = vmatpush1.bf16.msra.mxu0 0
    %808 = vmatprep.subr.bf16.mxu0 0
    %809 = vmatpush1.bf16.msra.mxu0 0
    %810 = vmatprep.subr.bf16.mxu0 0
    %811 = vmatpush1.bf16.msra.mxu0 0
    %812 = vmatprep.mubr.bf16.mxu0 0
    %813 = vmatmul.mubr.bf16.gmra.mrb[0].mxu0 %v775
    %v814 = vpop.f32.mrb[0].mxu0
    %v815 = vadd.f32 %v748, %v814
    %v816 = vpop.f32.mrb[0].mxu0
    %v817 = vpop.f32.mrb[0].mxu0
    %v818 = vadd.f32 %v751, %v817
    %v819 = vpop.f32.mrb[0].mxu0
    %820 = vmatprep.mubr.bf16.mxu0 0
    %821 = vmatmul.mubr.bf16.gmra.mrb[0].mxu0 %v778
    %v822 = vpop.f32.mrb[0].mxu0
    %v823 = vadd.f32 %v756, %v822
    %v824 = vpop.f32.mrb[0].mxu0
    %v825 = vpop.f32.mrb[0].mxu0
    %v826 = vadd.f32 %v759, %v825
    %v827 = vpop.f32.mrb[0].mxu0
    %828 = vdwg.mxu0
    %v829 = vlaneseq
    %v830 = vshrl.u32 %v829, 7
    %v831 = vsub.s32 6, %v830
    %v832 = vrot.slane %v78, %v831
    %v833 = vadd.f32 %v815, %v832
    %v834 = vadd.f32 %v818, %v832
    %v835 = vadd.f32 %v823, %v832
    %v836 = vadd.f32 %v826, %v832
    %v837 = vmax.f32 %v833, 0.0
    %v838 = vmax.f32 %v834, 0.0
    %v839 = vmax.f32 %v835, 0.0
    %v840 = vmax.f32 %v836, 0.0
    %v841 = vadd.f32 %v837, %v838
    %v842 = vadd.f32 %v841, %v839
    %v843 = vadd.f32 %v842, %v840
    %v844 = vrot.slane %v843, 4
    %v845 = vadd.f32 %v843, %v844
    %v846 = vrot.slane %v845, 2
    %v847 = vadd.f32 %v845, %v846
    %v848 = vrot.slane %v847, 1
    %v849 = vadd.f32 %v847, %v848
    %v850 = vmul.f32 %v849, 0.03125
    %v851 = vsub.f32 %v837, %v850
    %v852 = vsub.f32 %v838, %v850
    %v853 = vsub.f32 %v839, %v850
    %v854 = vsub.f32 %v840, %v850
    %v855 = vmul.f32 %v851, %v851
    %v856 = vmul.f32 %v852, %v852
    %v857 = vmul.f32 %v853, %v853
    %v858 = vmul.f32 %v854, %v854
    %v859 = vadd.f32 %v855, %v856
    %v860 = vadd.f32 %v859, %v857
    %v861 = vadd.f32 %v860, %v858
    %v862 = vrot.slane %v861, 4
    %v863 = vadd.f32 %v861, %v862
    %v864 = vrot.slane %v863, 2
    %v865 = vadd.f32 %v863, %v864
    %v866 = vrot.slane %v865, 1
    %v867 = vadd.f32 %v865, %v866
    %v868 = vmul.f32 %v867, 0.03125
    %v869 = vadd.f32 %v868, 1e-05
    %v870 = vrsqrt.pop %v869
    %v871 = vmul.f32 %v78, %v870
    %v872 = vlaneseq
    %v873 = vshrl.u32 %v872, 7
    %v874 = vsub.s32 7, %v873
    %v875 = vrot.slane %v871, %v874
    %v876 = vmul.f32 %v851, %v875
    %v877 = vmul.f32 %v852, %v875
    %v878 = vmul.f32 %v853, %v875
    %v879 = vmul.f32 %v854, %v875
    %v880 = vlaneseq
    %v881 = vshrl.u32 %v880, 7
    %v882 = vsub.s32 0, %v881
    %v883 = vrot.slane %v79, %v882
    %v884 = vadd.f32 %v876, %v883
    %v885 = vadd.f32 %v877, %v883
    %v886 = vadd.f32 %v878, %v883
    %v887 = vadd.f32 %v879, %v883
    %v888 = vld [vmem:[#allocation7 + $0x50] sm:$0xf]
    %v889 = vld [vmem:[#allocation7 + $0x54] sm:$0xf]
    %v890 = vld [vmem:[#allocation7 + $0x58] sm:$0xf]
    %v891 = vld [vmem:[#allocation7 + $0x5c] sm:$0xf]
    %v892 = vld [vmem:[#allocation7 + $0x60] sm:$0xf]
    %v893 = vld [vmem:[#allocation7 + $0x64] sm:$0xf]
    %v894 = vld [vmem:[#allocation7 + $0x68] sm:$0xf]
    %v895 = vld [vmem:[#allocation7 + $0x6c] sm:$0xf]
    %v900 = vunpack.c.l.b16 %v892
    %v901 = vunpack.c.l.b16 %v893
    %v902 = vunpack.c.l.b16 %v894
    %v903 = vunpack.c.l.b16 %v895
    %v904 = vpack.c.b16 %v901, %v900
    %v905 = vpack.c.b16 %v903, %v902
    %908 = vmatprep.subr.bf16.mxu0 0
    %909 = vmatpush1.bf16.msra.mxu0 %v904
    %910 = vmatprep.subr.bf16.mxu0 0
    %911 = vmatpush1.bf16.msra.mxu0 %v905
    %912 = vmatprep.subr.bf16.mxu0 0
    %913 = vmatpush1.bf16.msra.mxu0 0
    %914 = vmatprep.subr.bf16.mxu0 0
    %915 = vmatpush1.bf16.msra.mxu0 0
    %916 = vmatprep.subr.bf16.mxu0 0
    %917 = vmatpush1.bf16.msra.mxu0 0
    %918 = vmatprep.subr.bf16.mxu0 0
    %919 = vmatpush1.bf16.msra.mxu0 0
    %920 = vmatprep.subr.bf16.mxu0 0
    %921 = vmatpush1.bf16.msra.mxu0 0
    %922 = vmatprep.subr.bf16.mxu0 0
    %923 = vmatpush1.bf16.msra.mxu0 0
    %924 = vmatprep.subr.bf16.mxu0 0
    %925 = vmatpush1.bf16.msra.mxu0 0
    %926 = vmatprep.subr.bf16.mxu0 0
    %927 = vmatpush1.bf16.msra.mxu0 0
    %928 = vmatprep.subr.bf16.mxu0 0
    %929 = vmatpush1.bf16.msra.mxu0 0
    %930 = vmatprep.subr.bf16.mxu0 0
    %931 = vmatpush1.bf16.msra.mxu0 0
    %932 = vmatprep.subr.bf16.mxu0 0
    %933 = vmatpush1.bf16.msra.mxu0 0
    %934 = vmatprep.subr.bf16.mxu0 0
    %935 = vmatpush1.bf16.msra.mxu0 0
    %936 = vmatprep.subr.bf16.mxu0 0
    %937 = vmatpush1.bf16.msra.mxu0 0
    %938 = vmatprep.subr.bf16.mxu0 0
    %939 = vmatpush1.bf16.msra.mxu0 0
    %940 = vmatprep.mubr.bf16.mxu0 0
    %941 = vmatmul.mubr.bf16.gmra.mrb[0].mxu0 %v708
    %v942 = vpop.f32.mrb[0].mxu0
    %v943 = vadd.f32 0.0, %v942
    %v944 = vpop.f32.mrb[0].mxu0
    %v945 = vpop.f32.mrb[0].mxu0
    %v946 = vadd.f32 0.0, %v945
    %v947 = vpop.f32.mrb[0].mxu0
    %948 = vmatprep.mubr.bf16.mxu0 0
    %949 = vmatmul.mubr.bf16.gmra.mrb[0].mxu0 %v711
    %v950 = vpop.f32.mrb[0].mxu0
    %v951 = vadd.f32 0.0, %v950
    %v952 = vpop.f32.mrb[0].mxu0
    %v953 = vpop.f32.mrb[0].mxu0
    %v954 = vadd.f32 0.0, %v953
    %v955 = vpop.f32.mrb[0].mxu0
    %956 = vdwg.mxu0
    %v961 = vunpack.c.l.b16 %v888
    %v962 = vunpack.c.l.b16 %v889
    %v963 = vunpack.c.l.b16 %v890
    %v964 = vunpack.c.l.b16 %v891
    %v965 = vpack.c.b16 %v962, %v961
    %v966 = vpack.c.b16 %v964, %v963
    %969 = vmatprep.subr.bf16.mxu0 0
    %970 = vmatpush1.bf16.msra.mxu0 %v965
    %971 = vmatprep.subr.bf16.mxu0 0
    %972 = vmatpush1.bf16.msra.mxu0 %v966
    %973 = vmatprep.subr.bf16.mxu0 0
    %974 = vmatpush1.bf16.msra.mxu0 0
    %975 = vmatprep.subr.bf16.mxu0 0
    %976 = vmatpush1.bf16.msra.mxu0 0
    %977 = vmatprep.subr.bf16.mxu0 0
    %978 = vmatpush1.bf16.msra.mxu0 0
    %979 = vmatprep.subr.bf16.mxu0 0
    %980 = vmatpush1.bf16.msra.mxu0 0
    %981 = vmatprep.subr.bf16.mxu0 0
    %982 = vmatpush1.bf16.msra.mxu0 0
    %983 = vmatprep.subr.bf16.mxu0 0
    %984 = vmatpush1.bf16.msra.mxu0 0
    %985 = vmatprep.subr.bf16.mxu0 0
    %986 = vmatpush1.bf16.msra.mxu0 0
    %987 = vmatprep.subr.bf16.mxu0 0
    %988 = vmatpush1.bf16.msra.mxu0 0
    %989 = vmatprep.subr.bf16.mxu0 0
    %990 = vmatpush1.bf16.msra.mxu0 0
    %991 = vmatprep.subr.bf16.mxu0 0
    %992 = vmatpush1.bf16.msra.mxu0 0
    %993 = vmatprep.subr.bf16.mxu0 0
    %994 = vmatpush1.bf16.msra.mxu0 0
    %995 = vmatprep.subr.bf16.mxu0 0
    %996 = vmatpush1.bf16.msra.mxu0 0
    %997 = vmatprep.subr.bf16.mxu0 0
    %998 = vmatpush1.bf16.msra.mxu0 0
    %999 = vmatprep.subr.bf16.mxu0 0
    %1000 = vmatpush1.bf16.msra.mxu0 0
    %1001 = vmatprep.mubr.bf16.mxu0 0
    %1002 = vmatmul.mubr.bf16.gmra.mrb[0].mxu0 %v450
    %v1003 = vpop.f32.mrb[0].mxu0
    %v1004 = vadd.f32 %v943, %v1003
    %v1005 = vpop.f32.mrb[0].mxu0
    %v1006 = vpop.f32.mrb[0].mxu0
    %v1007 = vadd.f32 %v946, %v1006
    %v1008 = vpop.f32.mrb[0].mxu0
    %1009 = vmatprep.mubr.bf16.mxu0 0
    %1010 = vmatmul.mubr.bf16.gmra.mrb[0].mxu0 %v453
    %v1011 = vpop.f32.mrb[0].mxu0
    %v1012 = vadd.f32 %v951, %v1011
    %v1013 = vpop.f32.mrb[0].mxu0
    %v1014 = vpop.f32.mrb[0].mxu0
    %v1015 = vadd.f32 %v954, %v1014
    %v1016 = vpop.f32.mrb[0].mxu0
    %1017 = vdwg.mxu0
    %v1018 = vpack.c.bf16 %v885, %v884
    %v1019 = vpack.c.bf16 %v887, %v886
    %v1020 = vld [vmem:[#allocation7 + $0x70] sm:$0xf]
    %v1021 = vld [vmem:[#allocation7 + $0x74] sm:$0xf]
    %v1024 = vunpack.c.l.b16 %v1020
    %v1025 = vunpack.c.l.b16 %v1021
    %v1026 = vpack.c.b16 %v1025, %v1024
    %v1029 = vsel %vm196, %v1018, 0
    %v1032 = vsel %vm196, %v1019, 0
    %1034 = vmatprep.subr.bf16.mxu0 0
    %1035 = vmatpush1.bf16.msra.mxu0 %v1026
    %1036 = vmatprep.subr.bf16.mxu0 0
    %1037 = vmatpush1.bf16.msra.mxu0 0
    %1038 = vmatprep.subr.bf16.mxu0 0
    %1039 = vmatpush1.bf16.msra.mxu0 0
    %1040 = vmatprep.subr.bf16.mxu0 0
    %1041 = vmatpush1.bf16.msra.mxu0 0
    %1042 = vmatprep.subr.bf16.mxu0 0
    %1043 = vmatpush1.bf16.msra.mxu0 0
    %1044 = vmatprep.subr.bf16.mxu0 0
    %1045 = vmatpush1.bf16.msra.mxu0 0
    %1046 = vmatprep.subr.bf16.mxu0 0
    %1047 = vmatpush1.bf16.msra.mxu0 0
    %1048 = vmatprep.subr.bf16.mxu0 0
    %1049 = vmatpush1.bf16.msra.mxu0 0
    %1050 = vmatprep.subr.bf16.mxu0 0
    %1051 = vmatpush1.bf16.msra.mxu0 0
    %1052 = vmatprep.subr.bf16.mxu0 0
    %1053 = vmatpush1.bf16.msra.mxu0 0
    %1054 = vmatprep.subr.bf16.mxu0 0
    %1055 = vmatpush1.bf16.msra.mxu0 0
    %1056 = vmatprep.subr.bf16.mxu0 0
    %1057 = vmatpush1.bf16.msra.mxu0 0
    %1058 = vmatprep.subr.bf16.mxu0 0
    %1059 = vmatpush1.bf16.msra.mxu0 0
    %1060 = vmatprep.subr.bf16.mxu0 0
    %1061 = vmatpush1.bf16.msra.mxu0 0
    %1062 = vmatprep.subr.bf16.mxu0 0
    %1063 = vmatpush1.bf16.msra.mxu0 0
    %1064 = vmatprep.subr.bf16.mxu0 0
    %1065 = vmatpush1.bf16.msra.mxu0 0
    %1066 = vmatprep.mubr.bf16.mxu0 0
    %1067 = vmatmul.mubr.bf16.gmra.mrb[0].mxu0 %v1029
    %v1068 = vpop.f32.mrb[0].mxu0
    %v1069 = vadd.f32 0.0, %v1068
    %v1070 = vpop.f32.mrb[0].mxu0
    %v1071 = vpop.f32.mrb[0].mxu0
    %v1072 = vadd.f32 0.0, %v1071
    %v1073 = vpop.f32.mrb[0].mxu0
    %1074 = vmatprep.mubr.bf16.mxu0 0
    %1075 = vmatmul.mubr.bf16.gmra.mrb[0].mxu0 %v1032
    %v1076 = vpop.f32.mrb[0].mxu0
    %v1077 = vadd.f32 0.0, %v1076
    %v1078 = vpop.f32.mrb[0].mxu0
    %v1079 = vpop.f32.mrb[0].mxu0
    %v1080 = vadd.f32 0.0, %v1079
    %v1081 = vpop.f32.mrb[0].mxu0
    %1082 = vdwg.mxu0
    %v1083 = vadd.f32 %v1004, %v1069
    %v1084 = vadd.f32 %v1007, %v1072
    %v1085 = vadd.f32 %v1012, %v1077
    %v1086 = vadd.f32 %v1015, %v1080
    %v1087 = vlaneseq
    %v1088 = vshrl.u32 %v1087, 7
    %v1089 = vsub.s32 1, %v1088
    %v1090 = vrot.slane %v79, %v1089
    %v1091 = vadd.f32 %v1083, %v1090
    %v1092 = vadd.f32 %v1084, %v1090
    %v1093 = vadd.f32 %v1085, %v1090
    %v1094 = vadd.f32 %v1086, %v1090
    %v1095 = vmax.f32 %v1091, 0.0
    %v1096 = vmax.f32 %v1092, 0.0
    %v1097 = vmax.f32 %v1093, 0.0
    %v1098 = vmax.f32 %v1094, 0.0
    %1099 = vst [vmem:[#allocation10] sm:$0xff] %v1095
    %1100 = vst [vmem:[#allocation10 + $0x8] sm:$0xff] %v1096
    %1101 = vst [vmem:[#allocation10 + $0x10] sm:$0xff] %v1097
    %1102 = vst [vmem:[#allocation10 + $0x18] sm:$0xff] %v1098
    // Predicated region
    $region34: #{tpu_custom_call.1} parent=1 // pred_check
      _
    $region35: #{tpu_custom_call.1} parent=1 // pred_check_branch
      %1104 = sbr.rel (0) target = $region37
    $region36: #{tpu_custom_call.1} parent=1 // pred_region
      %s1106 = ssub.s32 512, 512
      %1107 = vsyncadd [#allocation4], %s1106
      %s1108 = sshll.u32 [#allocation10], 4
      %s1109 = int_to_ptr.vmem [resolvable:$true] %s1108
      %1114 = dma.vmem_to_hbm [thread:$0]  %s1109, 512, %s4, [#allocation4], 128, 128, 8
    $region37: #{tpu_custom_call.1} parent=1 // pred_fallthru
      _
    // Predicated region
    $region38: #{tpu_custom_call.1} parent=1 // pred_check
      _
    $region39: #{tpu_custom_call.1} parent=1 // pred_check_branch
      %1116 = sbr.rel (0) target = $region41
    $region40: #{tpu_custom_call.1} parent=1 // pred_region
      %1117 = dma.done [#allocation4], 512
    $region41: #{tpu_custom_call.1} parent=1 // pred_fallthru
      _
    %1118 = vsyncpa [#allocation3], 1
    %1119 = vsyncpa [#allocation6], 1
    %1120 = vsyncpa [#allocation9], 1
    %1121 = vsyncpa [#allocation4], 1

</llo_original>
